<compile_context>
chip_gen: v6e
topology: v6e:2x2x1
jax: 0.10.0
libtpu: 0.0.40
codegen_flags: <defaults>
</compile_context>

<pallas_src>
import jax
import jax.numpy as jnp
from jax.experimental import pallas as pl
from jax.experimental.pallas import tpu as pltpu


def _se_kernel(x_ref, w1t_ref, w2t_ref, o_ref):
    # x_ref  : (Bt, C, S)  input block, native dtype
    # w1t_ref: (C, Cr)     (W1 * 1/S).T -- pooling's 1/S folded in, f32
    # w2t_ref: (Cr, C)     W2.T, f32
    x = x_ref[...]                                           # native dtype

    # Global average pool: spatial sum with f32 accumulation (the 1/S scale is
    # folded into w1t on the host, so a plain sum suffices).
    pooled = jnp.sum(x, axis=-1, dtype=jnp.float32)          # (Bt, C)

    # FC1 + ReLU and FC2 + Hsigmoid on the MXU (f32 accumulate).
    h = jnp.dot(pooled, w1t_ref[...], preferred_element_type=jnp.float32)
    h = jnp.maximum(h, 0.0)                                  # (Bt, Cr)
    y = jnp.dot(h, w2t_ref[...], preferred_element_type=jnp.float32)
    y = jnp.clip(y + 3.0, 0.0, 6.0) * (1.0 / 6.0)            # hsigmoid, (Bt, C)

    # Channel-wise rescale in the input dtype (no f32 copy of the x tile).
    o_ref[...] = x * y[:, :, None].astype(x.dtype)


def _chip_tuning():
    """Per-generation knobs: (x-tile byte budget, vmem hard cap, min grid steps)."""
    kind = ""
    try:
        kind = (getattr(jax.devices()[0], "device_kind", "") or "").lower()
    except Exception:
        pass
    if "v7" in kind or "7x" in kind:
        # 2 TensorCores/chip, 64 MiB VMEM per TC, ~3.2 TB/s HBM: larger tiles
        # than v1's 4 MiB, but keep double-buffered in+out well under 64 MiB,
        # and insist on >= 4 grid steps so both cores get pipelined work.
        return (7 << 20), (56 << 20), 4
    if "v6" in kind or "v5e" in kind or "v5 lite" in kind or "v5lite" in kind:
        # 1 TensorCore/chip, 128 MiB VMEM: no batch split for a megacore it
        # doesn't have; bigger tiles and fewer grid steps.
        return (14 << 20), (100 << 20), 1
    # Unknown chip (v4/v5p/interpret/...): conservative defaults, assume a
    # possible 2-core split.
    return (6 << 20), (48 << 20), 2


@jax.jit
def se_module(x, w1, w2):
    """SE forward. x: (B, C, H, W) NCHW. w1: (C//r, C). w2: (C, C//r)."""
    B, C, H, W = x.shape
    Cr = w1.shape[0]
    S = H * W

    # No spatial or batch padding: this reshape is free and x streams through
    # the kernel exactly once (read + write, nothing else).
    x3 = x.reshape(B, C, S)

    # Host-side weight prep: fold the pooling's 1/S into W1, pre-transpose,
    # cast once to the f32 compute dtype (resident across the whole grid).
    w1t = (w1.astype(jnp.float32) * (1.0 / S)).T             # (C, Cr)
    w2t = w2.astype(jnp.float32).T                           # (Cr, C)

    itemsize = x.dtype.itemsize
    per_sample = C * S * itemsize
    budget, vmem_cap, min_steps = _chip_tuning()

    # Largest batch block under the x-tile budget (at least one sample/step).
    # TODO(synk): for layers where even a single sample's tile exceeds the
    # VMEM cap, add a spatial grid axis with a pooled accumulator (two-pass)
    # instead of clamping to Bt=1.
    Bt = max(1, min(budget // max(per_sample, 1), B))
    if min_steps > 1 and B >= 2:
        # Multi-TensorCore chip: give each core pipelined work (>= min_steps
        # grid steps) instead of one giant block.
        Bt = min(Bt, max(1, pl.cdiv(B, min(min_steps, B))))

    num_steps = pl.cdiv(B, Bt)

    # VMEM budget: double-buffered input + output tiles, resident weights,
    # plus headroom; clamped to a per-generation safe cap.
    tile_bytes = Bt * per_sample
    weight_bytes = 2 * C * Cr * 4
    vmem_need = 4 * tile_bytes + 2 * weight_bytes + (1 << 20)
    vmem_limit = int(min(max(32 << 20, vmem_need), vmem_cap))

    # Advisory hint: this op is HBM-bandwidth dominated (read x + write out).
    cost = pl.CostEstimate(
        flops=4 * B * C * Cr,                       # two (B,C)x(C,Cr) FC layers
        transcendentals=0,
        bytes_accessed=2 * B * C * S * itemsize)

    out = pl.pallas_call(
        _se_kernel,
        out_shape=jax.ShapeDtypeStruct((B, C, S), x.dtype),
        grid=(num_steps,),
        in_specs=[
            pl.BlockSpec((Bt, C, S), lambda b: (b, 0, 0)),    # Bt samples/step
            pl.BlockSpec((C, Cr), lambda b: (0, 0)),          # resident weight
            pl.BlockSpec((Cr, C), lambda b: (0, 0)),          # resident weight
        ],
        out_specs=pl.BlockSpec((Bt, C, S), lambda b: (b, 0, 0)),
        compiler_params=pltpu.CompilerParams(
            dimension_semantics=("parallel",),
            vmem_limit_bytes=vmem_limit,
        ),
        cost_estimate=cost,
    )(x3, w1t, w2t)

    return out.reshape(B, C, H, W)


def se_module_ref(x, w1, w2):
    """Pure-JAX reference mirroring the PyTorch forward."""
    pooled = jnp.mean(x.astype(jnp.float32), axis=(2, 3))        # (B, C)
    h = jnp.maximum(pooled @ w1.astype(jnp.float32).T, 0.0)      # (B, C//r)
    y = jnp.clip(h @ w2.astype(jnp.float32).T + 3.0, 0.0, 6.0) / 6.0
    return (x * y[:, :, None, None].astype(x.dtype)).astype(x.dtype)


if __name__ == "__main__":
    B, C, H, W = 4, 32, 14, 14        # S = 196; no padding anywhere
    reduction = 4
    Cr = C // reduction

    key = jax.random.PRNGKey(0)
    kx, kw1, kw2 = jax.random.split(key, 3)
    x = jax.random.normal(kx, (B, C, H, W), dtype=jnp.float32)
    # Deterministic synthetic weights (same shapes as nn.Linear, bias=False).
    w1 = jax.random.normal(kw1, (Cr, C), dtype=jnp.float32) * 0.5   # Linear(C, C//r)
    w2 = jax.random.normal(kw2, (C, Cr), dtype=jnp.float32) * 0.5   # Linear(C//r, C)

    out = jax.block_until_ready(se_module(x, w1, w2))
    ref = se_module_ref(x, w1, w2)

    assert out.shape == (B, C, H, W)
    assert jnp.allclose(out, ref, atol=1e-4, rtol=1e-4), float(
        jnp.max(jnp.abs(out - ref)))

    print("KERNEL_OK")
</pallas_src>

<mosaic_0001>
module attributes {stable_mosaic.version = 11 : i64} {
  func.func @_se_kernel(%arg0: i32, %arg1: memref<2x32x196xf32, #tpu.memory_space<vmem>>, %arg2: memref<32x8xf32, #tpu.memory_space<vmem>>, %arg3: memref<8x32xf32, #tpu.memory_space<vmem>>, %arg4: memref<2x32x196xf32, #tpu.memory_space<vmem>>) attributes {dimension_semantics = [#tpu.dimension_semantics<parallel>], iteration_bounds = array<i64: 2>, scalar_prefetch = 0 : i64, scratch_operands = 0 : i64, tpu.core_type = #tpu.core_type<tc>, window_params = [{transform_indices = @transform_0, window_bounds = array<i64: 2, 32, 196>}, {pipeline_mode = #tpu.pipeline_mode<synchronous>, transform_indices = @transform_1, window_bounds = array<i64: 32, 8>}, {pipeline_mode = #tpu.pipeline_mode<synchronous>, transform_indices = @transform_2, window_bounds = array<i64: 8, 32>}, {transform_indices = @transform_3, window_bounds = array<i64: 2, 32, 196>}]} {
    %c0 = arith.constant 0 : index
    %c0_0 = arith.constant 0 : index
    %c0_1 = arith.constant 0 : index
    %0 = vector.load %arg1[%c0, %c0_0, %c0_1] : memref<2x32x196xf32, #tpu.memory_space<vmem>>, vector<2x32x196xf32>
    %cst = arith.constant dense<0.000000e+00> : vector<2x32xf32>
    %1 = vector.multi_reduction <add>, %0, %cst [2] : vector<2x32x196xf32> to vector<2x32xf32>
    %c0_2 = arith.constant 0 : index
    %c0_3 = arith.constant 0 : index
    %2 = vector.load %arg2[%c0_2, %c0_3] : memref<32x8xf32, #tpu.memory_space<vmem>>, vector<32x8xf32>
    %cst_4 = arith.constant dense<0.000000e+00> : vector<2x8xf32>
    %3 = tpu.matmul %1, %2, %cst_4 {dimension_numbers = #tpu.dot_dimension_numbers<[1], [0], [0], [1], [0, 0, 1, 1], [], []>} : vector<2x32xf32>, vector<32x8xf32>, vector<2x8xf32> -> vector<2x8xf32>
    %cst_5 = arith.constant 0.000000e+00 : f32
    %4 = vector.broadcast %cst_5 : f32 to vector<2x8xf32>
    %5 = arith.maximumf %3, %4 : vector<2x8xf32>
    %c0_6 = arith.constant 0 : index
    %c0_7 = arith.constant 0 : index
    %6 = vector.load %arg3[%c0_6, %c0_7] : memref<8x32xf32, #tpu.memory_space<vmem>>, vector<8x32xf32>
    %cst_8 = arith.constant dense<0.000000e+00> : vector<2x32xf32>
    %7 = tpu.matmul %5, %6, %cst_8 {dimension_numbers = #tpu.dot_dimension_numbers<[1], [0], [0], [1], [0, 0, 1, 1], [], []>} : vector<2x8xf32>, vector<8x32xf32>, vector<2x32xf32> -> vector<2x32xf32>
    %cst_9 = arith.constant 3.000000e+00 : f32
    %8 = vector.broadcast %cst_9 : f32 to vector<2x32xf32>
    %9 = arith.addf %7, %8 : vector<2x32xf32>
    %cst_10 = arith.constant 0.000000e+00 : f32
    %cst_11 = arith.constant 6.000000e+00 : f32
    %10 = vector.broadcast %cst_10 : f32 to vector<2x32xf32>
    %11 = arith.maximumf %10, %9 : vector<2x32xf32>
    %12 = vector.broadcast %cst_11 : f32 to vector<2x32xf32>
    %13 = arith.minimumf %12, %11 : vector<2x32xf32>
    %cst_12 = arith.constant 0.166666672 : f32
    %14 = vector.broadcast %cst_12 : f32 to vector<2x32xf32>
    %15 = arith.mulf %13, %14 : vector<2x32xf32>
    %16 = vector.shape_cast %15 : vector<2x32xf32> to vector<2x32x1xf32>
    %17 = vector.broadcast %16 : vector<2x32x1xf32> to vector<2x32x196xf32>
    %18 = arith.mulf %0, %17 : vector<2x32x196xf32>
    %c0_13 = arith.constant 0 : index
    %c0_14 = arith.constant 0 : index
    %c0_15 = arith.constant 0 : index
    %19 = vector.load %arg4[%c0_13, %c0_14, %c0_15] : memref<2x32x196xf32, #tpu.memory_space<vmem>>, vector<2x32x196xf32>
    tpu.vector_store %arg4[%c0_13, %c0_14, %c0_15], %18 {strides = array<i32>} : memref<2x32x196xf32, #tpu.memory_space<vmem>>, vector<2x32x196xf32>,
    return
  }
  func.func @transform_0(%arg0: i32) -> (i32, i32, i32) {
    %c0_i32 = arith.constant 0 : i32
    %c0_i32_0 = arith.constant 0 : i32
    %c0_i32_1 = arith.constant 0 : i32
    return %arg0, %c0_i32, %c0_i32_0 : i32, i32, i32
  }
  func.func @transform_1(%arg0: i32) -> (i32, i32) {
    %c0_i32 = arith.constant 0 : i32
    %c0_i32_0 = arith.constant 0 : i32
    %c0_i32_1 = arith.constant 0 : i32
    return %c0_i32, %c0_i32_0 : i32, i32
  }
  func.func @transform_2(%arg0: i32) -> (i32, i32) {
    %c0_i32 = arith.constant 0 : i32
    %c0_i32_0 = arith.constant 0 : i32
    %c0_i32_1 = arith.constant 0 : i32
    return %c0_i32, %c0_i32_0 : i32, i32
  }
  func.func @transform_3(%arg0: i32) -> (i32, i32, i32) {
    %c0_i32 = arith.constant 0 : i32
    %c0_i32_0 = arith.constant 0 : i32
    %c0_i32_1 = arith.constant 0 : i32
    return %arg0, %c0_i32, %c0_i32_0 : i32, i32, i32
  }
}

</mosaic_0001>

<llo_original>
// kernel: se_module.1
$region0: #{se_module.1}
  #allocation0 [shape = 'u32[]', space=smem, size = 0x4, offset = 0x4, fixed_abs, tag = 'smem constant byte address 0x4 - core index']
  #allocation1 [shape = 'u32[144,128]{1,0:T(1,128)}', space=vmem, size = 0x12000, scoped, tag = 'internal scratch']
  %s0 = inlined_call_operand.vmem [shape: f32[4,32,196], index: 0, kind: input, shape index: {}]
  %s1 = inlined_call_operand.vmem [shape: f32[32,8], index: 1, kind: input, shape index: {}]
  %s2 = inlined_call_operand.vmem [shape: f32[8,32], index: 2, kind: input, shape index: {}]
  %s3 = inlined_call_operand.vmem [shape: f32[4,32,196], index: 3, kind: output, shape index: {}]
  %s4 = sld [smem:[#allocation0]]
  $region45: #{se_module.1} parent=0
    _
  %s6 = ssub.s32 1, %s4
  %s7 = scalar_select 0, %s6, %s4
  loop: start=0, step=1, limit=4
  $region2: #{se_module.1} parent=0 // loop_pre_header
    _
  $region3: #{se_module.1} parent=0 // loop_header
    %s9 = sphi 0, %s13
    %p10 = scmp.ge.s32.totalorder %s9, 4
    %s19 = sphi 0, %s21
    %s22 = sphi 0, %s19
    %s23 = sphi 0, %s22
    %s39 = sphi 0, %s23
    %s43 = sphi 0, %s43
    %s45 = sphi 0, %s43
    %s46 = sphi 0, %s45
    %s60 = sphi 0, %s46
    %s64 = sphi 0, %s64
    %s66 = sphi 0, %s64
    %s67 = sphi 0, %s66
    %s81 = sphi 0, %s67
    %s87 = sphi 0, %s89
    %s90 = sphi 0, %s87
    %s91 = sphi 0, %s90
    %s107 = sphi 0, %s91
  $region4: #{se_module.1} parent=0 // loop_header_branch
    %12 = sbr.rel (%p10) target = $region8
  $region5: #{se_module.1} parent=0 // loop_body
    %s14 = ssub.s32 %s9, 1
    %s15 = ssub.s32 %s9, 2
    %s16 = sadd.s32 %s9, 1
    %s17 = ssub.s32 %s9, %s16
    %p18 = scmp.eq.s32.totalorder %s17, 0
    %s20 = sadd.s32 %s19, 1
    %s21 = scalar_select %p18, %s19, %s20
    %p24 = pneg %p18
    %p25 = scmp.eq.s32.totalorder %s9, 1
    %p26 = por %p24, %p25
    %p27 = scmp.ne.s32.totalorder %s19, %s22
    %p28 = scmp.eq.s32.totalorder %s9, 0
    %p29 = por %p27, %p28
    %p30 = scmp.ne.s32.totalorder %s19, %s22
    %p31 = scmp.eq.s32.totalorder %s14, 1
    %p32 = por %p30, %p31
    %p33 = scmp.ne.s32.totalorder %s22, %s23
    %p34 = scmp.eq.s32.totalorder %s14, 0
    %p35 = por %p33, %p34
    %p36 = scmp.ne.s32.totalorder %s22, %s23
    %p37 = scmp.eq.s32.totalorder %s15, 1
    %p38 = por %p36, %p37
    %p40 = scmp.ne.s32.totalorder %s23, %s39
    %p41 = scmp.eq.s32.totalorder %s15, 0
    %p42 = por %p40, %p41
    %s44 = sadd.s32 %s43, 1
    %p47 = scmp.eq.s32.totalorder %s9, 1
    %p48 = scmp.ne.s32.totalorder %s43, %s45
    %p49 = scmp.eq.s32.totalorder %s9, 0
    %p50 = por %p48, %p49
    %p51 = scmp.ne.s32.totalorder %s43, %s45
    %p52 = scmp.eq.s32.totalorder %s14, 1
    %p53 = por %p51, %p52
    %p54 = scmp.ne.s32.totalorder %s45, %s46
    %p55 = scmp.eq.s32.totalorder %s14, 0
    %p56 = por %p54, %p55
    %p57 = scmp.ne.s32.totalorder %s45, %s46
    %p58 = scmp.eq.s32.totalorder %s15, 1
    %p59 = por %p57, %p58
    %p61 = scmp.ne.s32.totalorder %s46, %s60
    %p62 = scmp.eq.s32.totalorder %s15, 0
    %p63 = por %p61, %p62
    %s65 = sadd.s32 %s64, 1
    %p68 = scmp.eq.s32.totalorder %s9, 1
    %p69 = scmp.ne.s32.totalorder %s64, %s66
    %p70 = scmp.eq.s32.totalorder %s9, 0
    %p71 = por %p69, %p70
    %p72 = scmp.ne.s32.totalorder %s64, %s66
    %p73 = scmp.eq.s32.totalorder %s14, 1
    %p74 = por %p72, %p73
    %p75 = scmp.ne.s32.totalorder %s66, %s67
    %p76 = scmp.eq.s32.totalorder %s14, 0
    %p77 = por %p75, %p76
    %p78 = scmp.ne.s32.totalorder %s66, %s67
    %p79 = scmp.eq.s32.totalorder %s15, 1
    %p80 = por %p78, %p79
    %p82 = scmp.ne.s32.totalorder %s67, %s81
    %p83 = scmp.eq.s32.totalorder %s15, 0
    %p84 = por %p82, %p83
    %s85 = ssub.s32 %s9, %s16
    %p86 = scmp.eq.s32.totalorder %s85, 0
    %s88 = sadd.s32 %s87, 1
    %s89 = scalar_select %p86, %s87, %s88
    %p92 = pneg %p86
    %p93 = scmp.eq.s32.totalorder %s9, 1
    %p94 = por %p92, %p93
    %p95 = scmp.ne.s32.totalorder %s87, %s90
    %p96 = scmp.eq.s32.totalorder %s9, 0
    %p97 = por %p95, %p96
    %p98 = scmp.ne.s32.totalorder %s87, %s90
    %p99 = scmp.eq.s32.totalorder %s14, 1
    %p100 = por %p98, %p99
    %p101 = scmp.ne.s32.totalorder %s90, %s91
    %p102 = scmp.eq.s32.totalorder %s14, 0
    %p103 = por %p101, %p102
    %p104 = scmp.ne.s32.totalorder %s90, %s91
    %p105 = scmp.eq.s32.totalorder %s15, 1
    %p106 = por %p104, %p105
    %p108 = scmp.ne.s32.totalorder %s91, %s107
    %p109 = scmp.eq.s32.totalorder %s15, 0
    %p110 = por %p108, %p109
    %p111 = scmp.le.s32.totalorder 1, %s9
    %p112 = scmp.lt.s32.totalorder %s9, 3
    %p113 = pnand %p111, %p112
    %p114 = pneg %p113
    // Predicated region
    $region9: #{se_module.1} parent=5 // pred_check
      _
    $region10: #{se_module.1} parent=5 // pred_check_branch
      %116 = sbr.rel (%p113) target = $region12
    $region11: #{se_module.1} parent=5 // pred_region
      %s117 = ssub.s32 %s9, 1
      // Predicated region
      $region13: #{se_module.1} parent=11 // pred_check
        %p118 = pneg %p56
      $region14: #{se_module.1} parent=11 // pred_check_branch
        %120 = sbr.rel (%p118) target = $region16
      $region15: #{se_module.1} parent=11 // pred_region
        _
      $region16: #{se_module.1} parent=11 // pred_fallthru
        _
      // Predicated region
      $region17: #{se_module.1} parent=11 // pred_check
        %p121 = pneg %p77
      $region18: #{se_module.1} parent=11 // pred_check_branch
        %123 = sbr.rel (%p121) target = $region20
      $region19: #{se_module.1} parent=11 // pred_region
        _
      $region20: #{se_module.1} parent=11 // pred_fallthru
        _
    $region12: #{se_module.1} parent=5 // pred_fallthru
      _
    %p124 = scmp.lt.s32.totalorder %s9, 2
    // Predicated region
    $region21: #{se_module.1} parent=5 // pred_check
      %p125 = pneg %p124
    $region22: #{se_module.1} parent=5 // pred_check_branch
      %127 = sbr.rel (%p125) target = $region24
    $region23: #{se_module.1} parent=5 // pred_region
      // Predicated region
      $region25: #{se_module.1} parent=23 // pred_check
        %p128 = pneg %p29
      $region26: #{se_module.1} parent=23 // pred_check_branch
        %130 = sbr.rel (%p128) target = $region28
      $region27: #{se_module.1} parent=23 // pred_region
        %s131 = smul.u32 2, %s9
        %p132 = scmp.lt.s32.totalorder %s131, 3
        %s133 = scalar_select %p132, %s131, 3
        %s134 = smul.addr %s133, 8
        %s135 = smul.addr %s134, 8
        %s136 = scalar_lea.vmem %s0, %s135
        %s137 = smul.u32 2, %s9
      $region28: #{se_module.1} parent=23 // pred_fallthru
        _
    $region24: #{se_module.1} parent=5 // pred_fallthru
      _
    %p138 = scmp.le.s32.totalorder 1, %s9
    %p139 = scmp.lt.s32.totalorder %s9, 3
    %p140 = pnand %p138, %p139
    %p141 = pneg %p140
    // Predicated region
    $region29: #{se_module.1} parent=5 // pred_check
      _
    $region30: #{se_module.1} parent=5 // pred_check_branch
      %143 = sbr.rel (%p140) target = $region32
    $region31: #{se_module.1} parent=5 // pred_region
      %s144 = ssub.s32 %s9, 1
      %s145 = smul.u32 2, %s14
      %p146 = scmp.lt.s32.totalorder %s145, 3
      %s147 = scalar_select %p146, %s145, 3
      %s148 = smul.addr %s147, 8
      %s149 = smul.addr %s148, 8
      %s150 = scalar_lea.vmem %s0, %s149
      %p151 = pneg %p35
      %p152 = pneg %p32
      %p153 = pneg %p56
      %p154 = pneg %p53
      %p155 = pneg %p77
      %p156 = pneg %p74
      %p157 = pneg %p103
      %p158 = pneg %p100
      %s159 = smul.u32 2, %s14
      %p160 = scmp.lt.s32.totalorder %s159, 3
      %s161 = scalar_select %p160, %s159, 3
      %s162 = smul.addr %s161, 8
      %s163 = smul.addr %s162, 8
      %s164 = scalar_lea.vmem %s3, %s163
      %s165 = smul.u32 2, %s14
      %p166 = scmp.lt.s32.totalorder %s165, 3
      %s167 = scalar_select %p166, %s165, 3
      %s168 = smul.addr %s167, 8
      %s169 = smul.addr %s168, 8
      %s170 = scalar_lea.vmem %s0, %s169
      %s171 = smul.u32 2, %s14
      %s172 = smul.u32 2, %s14
      %p173 = scmp.lt.s32.totalorder %s172, 3
      %s174 = scalar_select %p173, %s172, 3
      %s175 = smul.addr %s174, 8
      %s176 = smul.addr %s175, 8
      %s177 = scalar_lea.vmem %s3, %s176
      %s178 = smul.u32 2, %s14
      %v179 = vld [vmem:[%s170] sm:$0xff]
      %v180 = vld [vmem:[%s170 + $0x8] sm:$0xff]
      %v181 = vld [vmem:[%s170 + $0x10] sm:$0xff]
      %v182 = vld [vmem:[%s170 + $0x18] sm:$0xff]
      %v183 = vld [vmem:[%s170 + $0x20] sm:$0xff]
      %v184 = vld [vmem:[%s170 + $0x28] sm:$0xff]
      %v185 = vld [vmem:[%s170 + $0x30] sm:$0xff]
      %v186 = vld [vmem:[%s170 + $0x38] sm:$0xff]
      %v187 = vld [vmem:[%s170 + $0x40] sm:$0xff]
      %v188 = vld [vmem:[%s170 + $0x48] sm:$0xff]
      %v189 = vld [vmem:[%s170 + $0x50] sm:$0xff]
      %v190 = vld [vmem:[%s170 + $0x58] sm:$0xff]
      %v191 = vld [vmem:[%s170 + $0x60] sm:$0xff]
      %v192 = vld [vmem:[%s170 + $0x68] sm:$0xff]
      %v193 = vld [vmem:[%s170 + $0x70] sm:$0xff]
      %v194 = vld [vmem:[%s170 + $0x78] sm:$0xff]
      %vm195 = vcmask 556032
      %v196 = vsel %vm195, %v180, 0.0
      %v197 = vadd.f32 %v179, %v196
      %198 = vadd.xlane.f32.xlu0 %v197
      %v199 = vpop.xlane.xlu0 %198
      %v200 = vsel %vm195, %v182, 0.0
      %v201 = vadd.f32 %v181, %v200
      %202 = vadd.xlane.f32.xlu0 %v201
      %v203 = vpop.xlane.xlu0 %202
      %v204 = vsel %vm195, %v184, 0.0
      %v205 = vadd.f32 %v183, %v204
      %206 = vadd.xlane.f32.xlu0 %v205
      %v207 = vpop.xlane.xlu0 %206
      %v208 = vsel %vm195, %v186, 0.0
      %v209 = vadd.f32 %v185, %v208
      %210 = vadd.xlane.f32.xlu0 %v209
      %v211 = vpop.xlane.xlu0 %210
      %v212 = vsel %vm195, %v188, 0.0
      %v213 = vadd.f32 %v187, %v212
      %214 = vadd.xlane.f32.xlu0 %v213
      %v215 = vpop.xlane.xlu0 %214
      %v216 = vsel %vm195, %v190, 0.0
      %v217 = vadd.f32 %v189, %v216
      %218 = vadd.xlane.f32.xlu0 %v217
      %v219 = vpop.xlane.xlu0 %218
      %v220 = vsel %vm195, %v192, 0.0
      %v221 = vadd.f32 %v191, %v220
      %222 = vadd.xlane.f32.xlu0 %v221
      %v223 = vpop.xlane.xlu0 %222
      %v224 = vsel %vm195, %v194, 0.0
      %v225 = vadd.f32 %v193, %v224
      %226 = vadd.xlane.f32.xlu0 %v225
      %v227 = vpop.xlane.xlu0 %226
      %v228 = vld [vmem:[%s1] sm:$0xff]
      %v229 = vld [vmem:[%s1 + $0x8] sm:$0xff]
      %v230 = vld [vmem:[%s1 + $0x10] sm:$0xff]
      %v231 = vld [vmem:[%s1 + $0x18] sm:$0xff]
      %v240 = vlaneseq
      %v241 = vand.u32 %v240, 127
      %v242 = vlaneseq
      %v243 = vshrl.u32 %v242, 7
      %v244 = vsub.s32 %v241, %v243
      %v245 = vrot.slane %v199, %v244
      %v246 = vadd.s32 %v241, 4294967288
      %v247 = vlaneseq
      %v248 = vshrl.u32 %v247, 7
      %v249 = vsub.s32 %v246, %v248
      %v250 = vrot.slane %v203, %v249
      %vm251 = vcmask 130112
      %v252 = vsel %vm251, %v250, %v245
      %v253 = vadd.s32 %v241, 4294967280
      %v254 = vlaneseq
      %v255 = vshrl.u32 %v254, 7
      %v256 = vsub.s32 %v253, %v255
      %v257 = vrot.slane %v207, %v256
      %vm258 = vcmask 195712
      %v259 = vsel %vm258, %v257, %v252
      %v260 = vadd.s32 %v241, 4294967272
      %v261 = vlaneseq
      %v262 = vshrl.u32 %v261, 7
      %v263 = vsub.s32 %v260, %v262
      %v264 = vrot.slane %v211, %v263
      %vm265 = vcmask 261312
      %v266 = vsel %vm265, %v264, %v259
      %v267 = vlaneseq
      %v268 = vshrl.u32 %v267, 7
      %v269 = vsub.s32 %v241, %v268
      %v270 = vrot.slane %v215, %v269
      %v271 = vlaneseq
      %v272 = vshrl.u32 %v271, 7
      %v273 = vsub.s32 %v246, %v272
      %v274 = vrot.slane %v219, %v273
      %v275 = vsel %vm251, %v274, %v270
      %v276 = vlaneseq
      %v277 = vshrl.u32 %v276, 7
      %v278 = vsub.s32 %v253, %v277
      %v279 = vrot.slane %v223, %v278
      %v280 = vsel %vm258, %v279, %v275
      %v281 = vlaneseq
      %v282 = vshrl.u32 %v281, 7
      %v283 = vsub.s32 %v260, %v282
      %v284 = vrot.slane %v227, %v283
      %v285 = vsel %vm265, %v284, %v280
      %vm286 = vcmask 1041409
      %v287 = vsel %vm286, %v285, %v266
      %vm288 = vcmask 261120
      %v289 = vsel %vm288, %v287, 0
      %291 = vmatprep.subr.mxu0 0.0
      %292 = vmatpush1.msra.mxu0 0.0
      %293 = vmatprep.subr.mxu0 0.0
      %294 = vmatpush1.msra.mxu0 0.0
      %295 = vmatprep.subr.mxu0 0.0
      %296 = vmatpush1.msra.mxu0 0.0
      %297 = vmatprep.subr.mxu0 0.0
      %298 = vmatpush1.msra.mxu0 0.0
      %299 = vmatprep.subr.mxu0 0.0
      %300 = vmatpush1.msra.mxu0 0.0
      %301 = vmatprep.subr.mxu0 0.0
      %302 = vmatpush1.msra.mxu0 0.0
      %303 = vmatprep.subr.mxu0 0.0
      %304 = vmatpush1.msra.mxu0 0.0
      %305 = vmatprep.subr.mxu0 0.0
      %306 = vmatpush1.msra.mxu0 0.0
      %307 = vmatprep.subr.mxu0 0.0
      %308 = vmatpush1.msra.mxu0 0.0
      %309 = vmatprep.subr.mxu0 0.0
      %310 = vmatpush1.msra.mxu0 0.0
      %311 = vmatprep.subr.mxu0 0.0
      %312 = vmatpush1.msra.mxu0 0.0
      %313 = vmatprep.subr.mxu0 0.0
      %314 = vmatpush1.msra.mxu0 0.0
      %315 = vmatprep.subr.mxu0 0.0
      %316 = vmatpush1.msra.mxu0 %v231
      %317 = vmatprep.subr.mxu0 0.0
      %318 = vmatpush1.msra.mxu0 %v230
      %319 = vmatprep.subr.mxu0 0.0
      %320 = vmatpush1.msra.mxu0 %v229
      %321 = vmatprep.subr.mxu0 0.0
      %322 = vmatpush1.msra.mxu0 %v228
      %323 = vmatprep.subr.mxu0 0.0
      %324 = vmatpush2.msra.mxu0 0.0
      %325 = vmatprep.subr.mxu0 0.0
      %326 = vmatpush2.msra.mxu0 0.0
      %327 = vmatprep.subr.mxu0 0.0
      %328 = vmatpush2.msra.mxu0 0.0
      %329 = vmatprep.subr.mxu0 0.0
      %330 = vmatpush2.msra.mxu0 0.0
      %331 = vmatprep.subr.mxu0 0.0
      %332 = vmatpush2.msra.mxu0 0.0
      %333 = vmatprep.subr.mxu0 0.0
      %334 = vmatpush2.msra.mxu0 0.0
      %335 = vmatprep.subr.mxu0 0.0
      %336 = vmatpush2.msra.mxu0 0.0
      %337 = vmatprep.subr.mxu0 0.0
      %338 = vmatpush2.msra.mxu0 0.0
      %339 = vmatprep.subr.mxu0 0.0
      %340 = vmatpush2.msra.mxu0 0.0
      %341 = vmatprep.subr.mxu0 0.0
      %342 = vmatpush2.msra.mxu0 0.0
      %343 = vmatprep.subr.mxu0 0.0
      %344 = vmatpush2.msra.mxu0 0.0
      %345 = vmatprep.subr.mxu0 0.0
      %346 = vmatpush2.msra.mxu0 0.0
      %347 = vmatprep.subr.mxu0 0.0
      %348 = vmatpush2.msra.mxu0 0.0
      %349 = vmatprep.subr.mxu0 0.0
      %350 = vmatpush2.msra.mxu0 0.0
      %351 = vmatprep.subr.mxu0 0.0
      %352 = vmatpush2.msra.mxu0 0.0
      %353 = vmatprep.subr.mxu0 0.0
      %354 = vmatpush2.msra.mxu0 0.0
      %355 = vmatprep.mubr.f32.mxu0 0.0
      %356 = vmatmul.mubr.f32.gmra.mxu0 %v289
      %v357 = vpop.f32.mrf.mxu0
      %v358 = vadd.f32 0.0, %v357
      %v359 = vpop.f32.mrf.mxu0
      %360 = vdwg.mxu0
      %v361 = vmax.f32 %v358, 0.0
      %v362 = vld [vmem:[%s2] sm:$0xff]
      %vm363 = vcmask 64512
      %v365 = vsel %vm363, %v361, 0
      %367 = vmatprep.subr.mxu0 0.0
      %368 = vmatpush1.msra.mxu0 0.0
      %369 = vmatprep.subr.mxu0 0.0
      %370 = vmatpush1.msra.mxu0 0.0
      %371 = vmatprep.subr.mxu0 0.0
      %372 = vmatpush1.msra.mxu0 0.0
      %373 = vmatprep.subr.mxu0 0.0
      %374 = vmatpush1.msra.mxu0 0.0
      %375 = vmatprep.subr.mxu0 0.0
      %376 = vmatpush1.msra.mxu0 0.0
      %377 = vmatprep.subr.mxu0 0.0
      %378 = vmatpush1.msra.mxu0 0.0
      %379 = vmatprep.subr.mxu0 0.0
      %380 = vmatpush1.msra.mxu0 0.0
      %381 = vmatprep.subr.mxu0 0.0
      %382 = vmatpush1.msra.mxu0 0.0
      %383 = vmatprep.subr.mxu0 0.0
      %384 = vmatpush1.msra.mxu0 0.0
      %385 = vmatprep.subr.mxu0 0.0
      %386 = vmatpush1.msra.mxu0 0.0
      %387 = vmatprep.subr.mxu0 0.0
      %388 = vmatpush1.msra.mxu0 0.0
      %389 = vmatprep.subr.mxu0 0.0
      %390 = vmatpush1.msra.mxu0 0.0
      %391 = vmatprep.subr.mxu0 0.0
      %392 = vmatpush1.msra.mxu0 0.0
      %393 = vmatprep.subr.mxu0 0.0
      %394 = vmatpush1.msra.mxu0 0.0
      %395 = vmatprep.subr.mxu0 0.0
      %396 = vmatpush1.msra.mxu0 0.0
      %397 = vmatprep.subr.mxu0 0.0
      %398 = vmatpush1.msra.mxu0 %v362
      %399 = vmatprep.subr.mxu0 0.0
      %400 = vmatpush2.msra.mxu0 0.0
      %401 = vmatprep.subr.mxu0 0.0
      %402 = vmatpush2.msra.mxu0 0.0
      %403 = vmatprep.subr.mxu0 0.0
      %404 = vmatpush2.msra.mxu0 0.0
      %405 = vmatprep.subr.mxu0 0.0
      %406 = vmatpush2.msra.mxu0 0.0
      %407 = vmatprep.subr.mxu0 0.0
      %408 = vmatpush2.msra.mxu0 0.0
      %409 = vmatprep.subr.mxu0 0.0
      %410 = vmatpush2.msra.mxu0 0.0
      %411 = vmatprep.subr.mxu0 0.0
      %412 = vmatpush2.msra.mxu0 0.0
      %413 = vmatprep.subr.mxu0 0.0
      %414 = vmatpush2.msra.mxu0 0.0
      %415 = vmatprep.subr.mxu0 0.0
      %416 = vmatpush2.msra.mxu0 0.0
      %417 = vmatprep.subr.mxu0 0.0
      %418 = vmatpush2.msra.mxu0 0.0
      %419 = vmatprep.subr.mxu0 0.0
      %420 = vmatpush2.msra.mxu0 0.0
      %421 = vmatprep.subr.mxu0 0.0
      %422 = vmatpush2.msra.mxu0 0.0
      %423 = vmatprep.subr.mxu0 0.0
      %424 = vmatpush2.msra.mxu0 0.0
      %425 = vmatprep.subr.mxu0 0.0
      %426 = vmatpush2.msra.mxu0 0.0
      %427 = vmatprep.subr.mxu0 0.0
      %428 = vmatpush2.msra.mxu0 0.0
      %429 = vmatprep.subr.mxu0 0.0
      %430 = vmatpush2.msra.mxu0 0.0
      %431 = vmatprep.mubr.f32.mxu0 0.0
      %432 = vmatmul.mubr.f32.gmra.mxu0 %v365
      %v433 = vpop.f32.mrf.mxu0
      %v434 = vadd.f32 3.0, %v433
      %v435 = vpop.f32.mrf.mxu0
      %436 = vdwg.mxu0
      %v437 = vmax.f32 %v434, 0.0
      %v438 = vmin.f32 %v437, 6.0
      %v439 = vmul.f32 %v438, 0.16666667
      %v440 = vlaneseq
      %v441 = vshrl.u32 %v440, 7
      %v442 = vsub.s32 0, %v441
      %v443 = vrot.slane %v439, %v442
      %445 = vbcast.lane.b32.xlu0 %v443, 256
      %v446 = vpop.permute.xlu0 %445
      %s448 = sor.u32 256, 8
      %449 = vbcast.lane.b32.xlu0 %v443, %s448
      %v450 = vpop.permute.xlu0 %449
      %s452 = sor.u32 256, 16
      %453 = vbcast.lane.b32.xlu0 %v443, %s452
      %v454 = vpop.permute.xlu0 %453
      %s456 = sor.u32 256, 24
      %457 = vbcast.lane.b32.xlu0 %v443, %s456
      %v458 = vpop.permute.xlu0 %457
      %v459 = vlaneseq
      %v460 = vshrl.u32 %v459, 7
      %v461 = vsub.s32 1, %v460
      %v462 = vrot.slane %v439, %v461
      %464 = vbcast.lane.b32.xlu0 %v462, 256
      %v465 = vpop.permute.xlu0 %464
      %s467 = sor.u32 256, 8
      %468 = vbcast.lane.b32.xlu0 %v462, %s467
      %v469 = vpop.permute.xlu0 %468
      %s471 = sor.u32 256, 16
      %472 = vbcast.lane.b32.xlu0 %v462, %s471
      %v473 = vpop.permute.xlu0 %472
      %s475 = sor.u32 256, 24
      %476 = vbcast.lane.b32.xlu0 %v462, %s475
      %v477 = vpop.permute.xlu0 %476
      %v478 = vmul.f32 %v179, %v446
      %v479 = vmul.f32 %v180, %v446
      %v480 = vmul.f32 %v181, %v450
      %v481 = vmul.f32 %v182, %v450
      %v482 = vmul.f32 %v183, %v454
      %v483 = vmul.f32 %v184, %v454
      %v484 = vmul.f32 %v185, %v458
      %v485 = vmul.f32 %v186, %v458
      %v486 = vmul.f32 %v187, %v465
      %v487 = vmul.f32 %v188, %v465
      %v488 = vmul.f32 %v189, %v469
      %v489 = vmul.f32 %v190, %v469
      %v490 = vmul.f32 %v191, %v473
      %v491 = vmul.f32 %v192, %v473
      %v492 = vmul.f32 %v193, %v477
      %v493 = vmul.f32 %v194, %v477
      %494 = vst [vmem:[%s177] sm:$0xff] %v478
      %495 = vst.msk [vmem:[%s177 + $0x8] sm:$0xff] %vm195, %v479
      %496 = vst [vmem:[%s177 + $0x10] sm:$0xff] %v480
      %497 = vst.msk [vmem:[%s177 + $0x18] sm:$0xff] %vm195, %v481
      %498 = vst [vmem:[%s177 + $0x20] sm:$0xff] %v482
      %499 = vst.msk [vmem:[%s177 + $0x28] sm:$0xff] %vm195, %v483
      %500 = vst [vmem:[%s177 + $0x30] sm:$0xff] %v484
      %501 = vst.msk [vmem:[%s177 + $0x38] sm:$0xff] %vm195, %v485
      %502 = vst [vmem:[%s177 + $0x40] sm:$0xff] %v486
      %503 = vst.msk [vmem:[%s177 + $0x48] sm:$0xff] %vm195, %v487
      %504 = vst [vmem:[%s177 + $0x50] sm:$0xff] %v488
      %505 = vst.msk [vmem:[%s177 + $0x58] sm:$0xff] %vm195, %v489
      %506 = vst [vmem:[%s177 + $0x60] sm:$0xff] %v490
      %507 = vst.msk [vmem:[%s177 + $0x68] sm:$0xff] %vm195, %v491
      %508 = vst [vmem:[%s177 + $0x70] sm:$0xff] %v492
      %509 = vst.msk [vmem:[%s177 + $0x78] sm:$0xff] %vm195, %v493
      %s510 = smul.u32 2, %s14
      %p511 = scmp.lt.s32.totalorder %s510, 3
      %s512 = scalar_select %p511, %s510, 3
      %s513 = smul.addr %s512, 8
      %s514 = smul.addr %s513, 8
      %s515 = scalar_lea.vmem %s3, %s514
      // Predicated region
      $region33: #{se_module.1} parent=31 // pred_check
        %p516 = pneg %p100
      $region34: #{se_module.1} parent=31 // pred_check_branch
        %518 = sbr.rel (%p516) target = $region36
      $region35: #{se_module.1} parent=31 // pred_region
        %s519 = smul.u32 2, %s14
      $region36: #{se_module.1} parent=31 // pred_fallthru
        _
    $region32: #{se_module.1} parent=5 // pred_fallthru
      _
    %p520 = scmp.le.s32.totalorder 2, %s9
    // Predicated region
    $region37: #{se_module.1} parent=5 // pred_check
      %p521 = pneg %p520
    $region38: #{se_module.1} parent=5 // pred_check_branch
      %523 = sbr.rel (%p521) target = $region40
    $region39: #{se_module.1} parent=5 // pred_region
      %s524 = ssub.s32 %s9, 2
      // Predicated region
      $region41: #{se_module.1} parent=39 // pred_check
        %p525 = pneg %p106
      $region42: #{se_module.1} parent=39 // pred_check_branch
        %527 = sbr.rel (%p525) target = $region44
      $region43: #{se_module.1} parent=39 // pred_region
        %s528 = smul.u32 2, %s15
        %p529 = scmp.lt.s32.totalorder %s528, 3
        %s530 = scalar_select %p529, %s528, 3
        %s531 = smul.addr %s530, 8
        %s532 = smul.addr %s531, 8
        %s533 = scalar_lea.vmem %s3, %s532
      $region44: #{se_module.1} parent=39 // pred_fallthru
        _
    $region40: #{se_module.1} parent=5 // pred_fallthru
      _
  $region6: #{se_module.1} parent=0 // loop_footer
    %s13 = sadd.s32 1, %s9
  $region7: #{se_module.1} parent=0 // loop_footer_branch
    %8 = sbr.rel target = $region3
  $region8: #{se_module.1} parent=0 // loop_exit
    _

</llo_original>
